<compile_context>
chip_gen: v7x
topology: tpu7x:2x2x1
jax: 0.10.0
libtpu: 0.0.40
codegen_flags: <defaults>
</compile_context>

<pallas_src>
import functools
import math

import jax
import jax.numpy as jnp
from jax import lax
from jax.experimental import pallas as pl
from jax.experimental.pallas import tpu as pltpu


# ---------------------------------------------------------------------------
# Kernel
# ---------------------------------------------------------------------------
def cri_mlp_kernel(x_ref, gp_ref, w1_ref, b1_ref, w2_ref, b2_ref, w3_ref, b3_ref,
                   o_ref):
    # x_ref : (TILE_B, in_dim) f32   batch-major, streamed straight from HBM
    # gp_ref: (6,) f32 SMEM          [ni0, ni1, ni2, gw0, gw1, gw2], ni = -1/(2*p_d^2)
    # w1_ref: (hidden+7, in_dim) bf16 rows [0:h)=W1^T, [h:h+6)=one-hot picks of x cols
    #                                 30..35, row h+6 = simple-branch linear column
    # b1_ref: (hidden+7, 1) f32
    # w2_ref: (hidden, hidden) bf16   W2^T
    # b2_ref: (hidden, 1) f32
    # w3_ref: (hidden, out_dim) f32
    # b3_ref: (out_dim, 1) f32
    # o_ref : (out_dim, TILE_B) f32   feature-major -> lane-dense stores
    hidden = w2_ref.shape[0]
    out_dim = w3_ref.shape[1]

    xb = x_ref[...].astype(jnp.bfloat16)                                # (TB, in)

    # Layer 1, fused with: simple-branch linear row + 6 gaussian-feature gather
    # rows.  Contract the feature axes of both operands so the result is
    # feature-major (h+7, TB); x's "transpose" rides the MXU operand path.
    h1p = lax.dot_general(w1_ref[...], xb, (((1,), (1,)), ((), ())),
                          preferred_element_type=jnp.float32) + b1_ref[...]
    h1 = jnp.maximum(h1p[:hidden, :], 0.0).astype(jnp.bfloat16)         # (h, TB)
    g = h1p[hidden:hidden + 6, :]                                       # (6, TB) == x[:,30:36]^T
    simple_lin = h1p[hidden + 6:hidden + 7, :]                          # (1, TB), no ReLU

    # Gaussian features, lane-dense; exp goes to the otherwise-idle EUP.
    q = g * g
    v_ice = jnp.exp((q[0:1, :] + q[1:2, :]) * gp_ref[0])
    v_ore = jnp.exp((q[2:3, :] + q[3:4, :]) * gp_ref[1])
    v_fac = jnp.exp((q[4:5, :] + q[5:6, :]) * gp_ref[2])
    gauss = v_ice * gp_ref[3] + v_ore * gp_ref[4] + v_fac * gp_ref[5]   # (1, TB)

    # Layer 2 (MXU, bf16 in / f32 accumulate).  h2 stays f32 (no bf16 cast).
    h2 = jnp.maximum(
        jnp.dot(w2_ref[...], h1, preferred_element_type=jnp.float32) + b2_ref[...],
        0.0)                                                            # (h, TB) f32

    # Layer 3.
    if out_dim == 1:
        # <1%-utilized (1,h)x(h,TB) MXU matmul replaced by VPU multiply + sublane
        # reduction (VPU/XLU have slack; MXU push cadence is the binding unit).
        deep = jnp.sum(w3_ref[...] * h2, axis=0, keepdims=True) + b3_ref[...]
    else:
        deep = lax.dot_general(w3_ref[...], h2, (((0,), (0,)), ((), ())),
                               preferred_element_type=jnp.float32) + b3_ref[...]

    o_ref[...] = (simple_lin + gauss) + deep                            # (out, TB)


# ---------------------------------------------------------------------------
# Tile selection
# ---------------------------------------------------------------------------
def _round_up(v, m):
    return -(-v // m) * m


def _tensorcores_per_chip():
    # Megacore-aware clamp only matters on 2-TC chips (v7x); safe fallback = 1.
    try:
        kind = jax.devices()[0].device_kind.lower()
    except Exception:
        return 1
    return 2 if ("v7" in kind or "tpu7" in kind) else 1


def _pick_tile_b(batch, requested, n_cores):
    # Default 2048 amortizes the ~0.35us/grid-step overhead; cap at 4096 (v5e's
    # single vst slot / lower BW makes very large f32 intermediates less attractive).
    t = max(128, (min(requested, 4096) // 128) * 128)
    t = min(t, _round_up(batch, 128))
    if n_cores > 1:
        # >= 2 grid steps per TensorCore so megacore sharding and the i+1 prefetch /
        # i-1 writeback overlap both engage.
        per_core = _round_up(max(1, -(-batch // (2 * n_cores))), 128)
        t = min(t, per_core)
    return t


# ---------------------------------------------------------------------------
# Wrapper
# ---------------------------------------------------------------------------
@functools.partial(jax.jit, static_argnames=("tile_b",))
def cri_mlp_forward(x, prep, *, tile_b=2048):
    B, in_dim = x.shape
    hidden = prep["w2_t"].shape[0]
    out_dim = prep["w3_col"].shape[1]
    assert in_dim >= 39, "forward slices x columns up to index 38"
    assert prep["w1_big"].shape == (hidden + 7, in_dim)

    tb = _pick_tile_b(B, tile_b, _tensorcores_per_chip())
    num_tiles = pl.cdiv(B, tb)          # no explicit padding: ragged last block is masked

    flops = 2 * B * (in_dim * (hidden + 7) + hidden * hidden + hidden * out_dim)
    bytes_accessed = (
        B * in_dim * 4 + B * out_dim * 4
        + ((hidden + 7) * in_dim + hidden * hidden) * 2
        + (hidden * out_dim + (hidden + 7) + hidden + out_dim + 6) * 4)

    out_t = pl.pallas_call(
        cri_mlp_kernel,
        grid=(num_tiles,),
        in_specs=[
            # x: streamed per batch tile (double-buffered by Pallas), f32 as given.
            pl.BlockSpec((tb, in_dim), lambda i: (i, 0)),
            # gaussian scalars in SMEM (whole array).
            pl.BlockSpec(memory_space=pltpu.MemorySpace.SMEM),
            # weights/biases: constant block index -> DMA'd once, VMEM-resident.
            pl.BlockSpec((hidden + 7, in_dim), lambda i: (0, 0)),      # w1_big
            pl.BlockSpec((hidden + 7, 1), lambda i: (0, 0)),           # b1_big
            pl.BlockSpec((hidden, hidden), lambda i: (0, 0)),          # w2_t
            pl.BlockSpec((hidden, 1), lambda i: (0, 0)),               # b2
            pl.BlockSpec((hidden, out_dim), lambda i: (0, 0)),         # w3_col
            pl.BlockSpec((out_dim, 1), lambda i: (0, 0)),              # b3
        ],
        out_specs=pl.BlockSpec((out_dim, tb), lambda i: (0, i)),
        out_shape=jax.ShapeDtypeStruct((out_dim, B), jnp.float32),
        compiler_params=pltpu.CompilerParams(
            dimension_semantics=("parallel",)),        # 2 TCs on v7x, no-op elsewhere
        cost_estimate=pl.CostEstimate(
            flops=flops, transcendentals=3 * B, bytes_accessed=bytes_accessed),
    )(x, prep["gparams"], prep["w1_big"], prep["b1_big"], prep["w2_t"],
      prep["b2"], prep["w3_col"], prep["b3"])

    # back to module layout (B, out_dim); trivial for out_dim == 1.
    return out_t.T


# ---------------------------------------------------------------------------
# Parameter construction (matches the module's __init__ init schemes)
# ---------------------------------------------------------------------------
def xavier_uniform(key, fan_in, fan_out, gain):
    bound = gain * math.sqrt(6.0 / (fan_in + fan_out))
    return jax.random.uniform(key, (fan_in, fan_out), jnp.float32, -bound, bound)


def init_params(key, in_dim, out_dim, hidden_dim=64):
    gain = math.sqrt(2.0)  # nn.init.calculate_gain('relu')
    k1, k2, k3 = jax.random.split(key, 3)
    return {
        "p_d": jnp.ones((3,), jnp.float32),
        "scales": jnp.ones((5,), jnp.float32),          # unused in forward
        "simple_w": jnp.ones((7,), jnp.float32),        # Linear(7,1): weight = 1
        "simple_b": jnp.zeros((1,), jnp.float32),       #              bias   = 0
        "w1": xavier_uniform(k1, in_dim, hidden_dim, gain),
        "b1": jnp.full((hidden_dim,), 0.01, jnp.float32),
        "w2": xavier_uniform(k2, hidden_dim, hidden_dim, gain),
        "b2": jnp.full((hidden_dim,), 0.01, jnp.float32),
        "w3": xavier_uniform(k3, hidden_dim, out_dim, gain),
        "b3": jnp.full((out_dim,), 0.01, jnp.float32),
    }


def prepare_params(p):
    """Kernel-ready operands: bf16 layer-1 weight augmented with 6 one-hot rows that
    gather x[:,30:36] (gaussian features) and 1 row for the simple-branch linear term;
    bf16 layer-2 weight; f32 biases as columns; gaussian scalars packed for SMEM."""
    in_dim, hidden = p["w1"].shape
    out_dim = p["w3"].shape[1]
    simple_col = jnp.zeros((in_dim,), jnp.float32).at[
        jnp.array([2, 3, 4, 38])].set(p["simple_w"][:4])
    sel = jnp.zeros((6, in_dim), jnp.float32).at[
        jnp.arange(6), jnp.arange(30, 36)].set(1.0)
    w1_big = jnp.concatenate([p["w1"].T, sel, simple_col[None, :]],
                             axis=0).astype(jnp.bfloat16)                 # (h+7, in)
    b1_big = jnp.concatenate([p["b1"], jnp.zeros((6,), jnp.float32),
                              p["simple_b"]], axis=0).reshape(hidden + 7, 1)
    ni = -1.0 / (2.0 * p["p_d"] ** 2)
    return {
        "w1_big": w1_big,
        "b1_big": b1_big.astype(jnp.float32),
        "w2_t": p["w2"].T.astype(jnp.bfloat16),
        "b2": p["b2"].reshape(hidden, 1).astype(jnp.float32),
        "w3_col": p["w3"].astype(jnp.float32),                            # (h, out)
        "b3": p["b3"].reshape(out_dim, 1).astype(jnp.float32),
        "gparams": jnp.concatenate([ni, p["simple_w"][4:7]]).astype(jnp.float32),
    }


# ---------------------------------------------------------------------------
# References
# ---------------------------------------------------------------------------
def reference_forward(x, p):
    """Plain-JAX f32 reference of the PyTorch forward (module semantics)."""
    hp = lax.Precision.HIGHEST
    v_ice = jnp.exp(-(x[:, 30:31] ** 2 + x[:, 31:32] ** 2) / (2 * p["p_d"][0] ** 2))
    v_ore = jnp.exp(-(x[:, 32:33] ** 2 + x[:, 33:34] ** 2) / (2 * p["p_d"][1] ** 2))
    v_fac = jnp.exp(-(x[:, 34:35] ** 2 + x[:, 35:36] ** 2) / (2 * p["p_d"][2] ** 2))
    simple_in = jnp.concatenate(
        [x[:, 2:3], x[:, 3:4], x[:, 4:5], x[:, 38:39], v_ice, v_ore, v_fac], axis=1)
    simple = jnp.dot(simple_in, p["simple_w"][:, None], precision=hp) + p["simple_b"]
    h = jnp.maximum(jnp.dot(x, p["w1"], precision=hp) + p["b1"], 0.0)
    h = jnp.maximum(jnp.dot(h, p["w2"], precision=hp) + p["b2"], 0.0)
    deep = jnp.dot(h, p["w3"], precision=hp) + p["b3"]
    return simple + deep


def reference_forward_kernel_precision(x, p):
    """Same math, mirroring the kernel's bf16 rounding (x, w1, w2, simple weights,
    h1 activations) with f32 accumulation and f32 layer 3 -> tight comparison."""
    r = lambda a: a.astype(jnp.bfloat16).astype(jnp.float32)
    hp = lax.Precision.HIGHEST
    xq = r(x)
    v_ice = jnp.exp(-(xq[:, 30:31] ** 2 + xq[:, 31:32] ** 2) / (2 * p["p_d"][0] ** 2))
    v_ore = jnp.exp(-(xq[:, 32:33] ** 2 + xq[:, 33:34] ** 2) / (2 * p["p_d"][1] ** 2))
    v_fac = jnp.exp(-(xq[:, 34:35] ** 2 + xq[:, 35:36] ** 2) / (2 * p["p_d"][2] ** 2))
    sw = r(p["simple_w"][:4])
    simple_lin = (xq[:, 2:3] * sw[0] + xq[:, 3:4] * sw[1] + xq[:, 4:5] * sw[2]
                  + xq[:, 38:39] * sw[3] + p["simple_b"])
    gauss = (v_ice * p["simple_w"][4] + v_ore * p["simple_w"][5]
             + v_fac * p["simple_w"][6])
    h = r(jnp.maximum(jnp.dot(xq, r(p["w1"]), precision=hp) + p["b1"], 0.0))
    h2 = jnp.maximum(jnp.dot(h, r(p["w2"]), precision=hp) + p["b2"], 0.0)
    deep = jnp.dot(h2, p["w3"], precision=hp) + p["b3"]
    return simple_lin + gauss + deep


if __name__ == "__main__":
    B, in_dim, hidden_dim = 300, 48, 64   # small; in_dim must be >= 39 for the slicing

    key = jax.random.PRNGKey(0)
    kx, kp = jax.random.split(key)
    x = jax.random.normal(kx, (B, in_dim), jnp.float32)

    # --- out_dim = 1 (critic head): VPU/sublane-reduce layer-3 path, multi-tile grid,
    #     ragged (masked) last batch block -------------------------------------------
    params1 = init_params(kp, in_dim, 1, hidden_dim)
    prep1 = prepare_params(params1)
    out1 = jax.block_until_ready(cri_mlp_forward(x, prep1, tile_b=128))
    assert out1.shape == (B, 1)
    ref1_kp = reference_forward_kernel_precision(x, params1)
    assert jnp.allclose(out1, ref1_kp, atol=2e-2, rtol=2e-2), (
        float(jnp.max(jnp.abs(out1 - ref1_kp))))
    assert float(jnp.max(jnp.abs(out1 - reference_forward(x, params1)))) < 0.25

    # --- out_dim > 1: MXU layer-3 fallback + default tile picker ---------------------
    params4 = init_params(jax.random.fold_in(kp, 1), in_dim, 4, hidden_dim)
    prep4 = prepare_params(params4)
    out4 = jax.block_until_ready(cri_mlp_forward(x, prep4))
    assert out4.shape == (B, 4)
    ref4_kp = reference_forward_kernel_precision(x, params4)
    assert jnp.allclose(out4, ref4_kp, atol=2e-2, rtol=2e-2), (
        float(jnp.max(jnp.abs(out4 - ref4_kp))))
    assert float(jnp.max(jnp.abs(out4 - reference_forward(x, params4)))) < 0.25

    print("KERNEL_OK")
</pallas_src>

<mosaic_0001>
module attributes {stable_mosaic.version = 11 : i64} {
  func.func @cri_mlp_kernel(%arg0: i32, %arg1: memref<128x48xf32, #tpu.memory_space<vmem>>, %arg2: memref<6xf32, #tpu.memory_space<smem>>, %arg3: memref<71x48xbf16, #tpu.memory_space<vmem>>, %arg4: memref<71x1xf32, #tpu.memory_space<vmem>>, %arg5: memref<64x64xbf16, #tpu.memory_space<vmem>>, %arg6: memref<64x1xf32, #tpu.memory_space<vmem>>, %arg7: memref<64x1xf32, #tpu.memory_space<vmem>>, %arg8: memref<1x1xf32, #tpu.memory_space<vmem>>, %arg9: memref<1x128xf32, #tpu.memory_space<vmem>>) attributes {dimension_semantics = [#tpu.dimension_semantics<parallel>], iteration_bounds = array<i64: 3>, scalar_prefetch = 0 : i64, scratch_operands = 0 : i64, tpu.core_type = #tpu.core_type<tc>, window_params = [{transform_indices = @transform_0, window_bounds = array<i64: 128, 48>}, {transform_indices = @transform_1, window_bounds = array<i64: 6>}, {pipeline_mode = #tpu.pipeline_mode<synchronous>, transform_indices = @transform_2, window_bounds = array<i64: 71, 48>}, {pipeline_mode = #tpu.pipeline_mode<synchronous>, transform_indices = @transform_3, window_bounds = array<i64: 71, 1>}, {pipeline_mode = #tpu.pipeline_mode<synchronous>, transform_indices = @transform_4, window_bounds = array<i64: 64, 64>}, {pipeline_mode = #tpu.pipeline_mode<synchronous>, transform_indices = @transform_5, window_bounds = array<i64: 64, 1>}, {pipeline_mode = #tpu.pipeline_mode<synchronous>, transform_indices = @transform_6, window_bounds = array<i64: 64, 1>}, {pipeline_mode = #tpu.pipeline_mode<synchronous>, transform_indices = @transform_7, window_bounds = array<i64: 1, 1>}, {transform_indices = @transform_8, window_bounds = array<i64: 1, 128>}]} {
    %c0 = arith.constant 0 : index
    %c0_0 = arith.constant 0 : index
    %0 = vector.load %arg1[%c0, %c0_0] : memref<128x48xf32, #tpu.memory_space<vmem>>, vector<128x48xf32>
    %1 = arith.truncf %0 : vector<128x48xf32> to vector<128x48xbf16>
    %c0_1 = arith.constant 0 : index
    %c0_2 = arith.constant 0 : index
    %2 = vector.load %arg3[%c0_1, %c0_2] : memref<71x48xbf16, #tpu.memory_space<vmem>>, vector<71x48xbf16>
    %cst = arith.constant dense<0.000000e+00> : vector<71x128xf32>
    %3 = tpu.matmul %2, %1, %cst {dimension_numbers = #tpu.dot_dimension_numbers<[1], [1], [0], [0], [0, 0, 1, 0], [], []>} : vector<71x48xbf16>, vector<128x48xbf16>, vector<71x128xf32> -> vector<71x128xf32>
    %c0_3 = arith.constant 0 : index
    %c0_4 = arith.constant 0 : index
    %4 = vector.load %arg4[%c0_3, %c0_4] : memref<71x1xf32, #tpu.memory_space<vmem>>, vector<71x1xf32>
    %5 = vector.broadcast %4 : vector<71x1xf32> to vector<71x128xf32>
    %6 = arith.addf %3, %5 : vector<71x128xf32>
    %7 = vector.extract_strided_slice %6 {offsets = [0, 0], sizes = [64, 128], strides = [1, 1]} : vector<71x128xf32> to vector<64x128xf32>
    %cst_5 = arith.constant 0.000000e+00 : f32
    %8 = vector.broadcast %cst_5 : f32 to vector<64x128xf32>
    %9 = arith.maximumf %7, %8 : vector<64x128xf32>
    %10 = arith.truncf %9 : vector<64x128xf32> to vector<64x128xbf16>
    %11 = vector.extract_strided_slice %6 {offsets = [64, 0], sizes = [6, 128], strides = [1, 1]} : vector<71x128xf32> to vector<6x128xf32>
    %12 = vector.extract_strided_slice %6 {offsets = [70, 0], sizes = [1, 128], strides = [1, 1]} : vector<71x128xf32> to vector<1x128xf32>
    %13 = arith.mulf %11, %11 : vector<6x128xf32>
    %14 = vector.extract_strided_slice %13 {offsets = [0, 0], sizes = [1, 128], strides = [1, 1]} : vector<6x128xf32> to vector<1x128xf32>
    %15 = vector.extract_strided_slice %13 {offsets = [1, 0], sizes = [1, 128], strides = [1, 1]} : vector<6x128xf32> to vector<1x128xf32>
    %16 = arith.addf %14, %15 : vector<1x128xf32>
    %c0_6 = arith.constant 0 : index
    %17 = memref.load %arg2[%c0_6] : memref<6xf32, #tpu.memory_space<smem>>
    %18 = vector.broadcast %17 : f32 to vector<1x128xf32>
    %19 = arith.mulf %16, %18 : vector<1x128xf32>
    %20 = math.exp %19 : vector<1x128xf32>
    %21 = vector.extract_strided_slice %13 {offsets = [2, 0], sizes = [1, 128], strides = [1, 1]} : vector<6x128xf32> to vector<1x128xf32>
    %22 = vector.extract_strided_slice %13 {offsets = [3, 0], sizes = [1, 128], strides = [1, 1]} : vector<6x128xf32> to vector<1x128xf32>
    %23 = arith.addf %21, %22 : vector<1x128xf32>
    %c1 = arith.constant 1 : index
    %24 = memref.load %arg2[%c1] : memref<6xf32, #tpu.memory_space<smem>>
    %25 = vector.broadcast %24 : f32 to vector<1x128xf32>
    %26 = arith.mulf %23, %25 : vector<1x128xf32>
    %27 = math.exp %26 : vector<1x128xf32>
    %28 = vector.extract_strided_slice %13 {offsets = [4, 0], sizes = [1, 128], strides = [1, 1]} : vector<6x128xf32> to vector<1x128xf32>
    %29 = vector.extract_strided_slice %13 {offsets = [5, 0], sizes = [1, 128], strides = [1, 1]} : vector<6x128xf32> to vector<1x128xf32>
    %30 = arith.addf %28, %29 : vector<1x128xf32>
    %c2 = arith.constant 2 : index
    %31 = memref.load %arg2[%c2] : memref<6xf32, #tpu.memory_space<smem>>
    %32 = vector.broadcast %31 : f32 to vector<1x128xf32>
    %33 = arith.mulf %30, %32 : vector<1x128xf32>
    %34 = math.exp %33 : vector<1x128xf32>
    %c3 = arith.constant 3 : index
    %35 = memref.load %arg2[%c3] : memref<6xf32, #tpu.memory_space<smem>>
    %36 = vector.broadcast %35 : f32 to vector<1x128xf32>
    %37 = arith.mulf %20, %36 : vector<1x128xf32>
    %c4 = arith.constant 4 : index
    %38 = memref.load %arg2[%c4] : memref<6xf32, #tpu.memory_space<smem>>
    %39 = vector.broadcast %38 : f32 to vector<1x128xf32>
    %40 = arith.mulf %27, %39 : vector<1x128xf32>
    %41 = arith.addf %37, %40 : vector<1x128xf32>
    %c5 = arith.constant 5 : index
    %42 = memref.load %arg2[%c5] : memref<6xf32, #tpu.memory_space<smem>>
    %43 = vector.broadcast %42 : f32 to vector<1x128xf32>
    %44 = arith.mulf %34, %43 : vector<1x128xf32>
    %45 = arith.addf %41, %44 : vector<1x128xf32>
    %c0_7 = arith.constant 0 : index
    %c0_8 = arith.constant 0 : index
    %46 = vector.load %arg5[%c0_7, %c0_8] : memref<64x64xbf16, #tpu.memory_space<vmem>>, vector<64x64xbf16>
    %cst_9 = arith.constant dense<0.000000e+00> : vector<64x128xf32>
    %47 = tpu.matmul %46, %10, %cst_9 {dimension_numbers = #tpu.dot_dimension_numbers<[1], [0], [0], [1], [0, 0, 1, 1], [], []>} : vector<64x64xbf16>, vector<64x128xbf16>, vector<64x128xf32> -> vector<64x128xf32>
    %c0_10 = arith.constant 0 : index
    %c0_11 = arith.constant 0 : index
    %48 = vector.load %arg6[%c0_10, %c0_11] : memref<64x1xf32, #tpu.memory_space<vmem>>, vector<64x1xf32>
    %49 = vector.broadcast %48 : vector<64x1xf32> to vector<64x128xf32>
    %50 = arith.addf %47, %49 : vector<64x128xf32>
    %cst_12 = arith.constant 0.000000e+00 : f32
    %51 = vector.broadcast %cst_12 : f32 to vector<64x128xf32>
    %52 = arith.maximumf %50, %51 : vector<64x128xf32>
    %c0_13 = arith.constant 0 : index
    %c0_14 = arith.constant 0 : index
    %53 = vector.load %arg7[%c0_13, %c0_14] : memref<64x1xf32, #tpu.memory_space<vmem>>, vector<64x1xf32>
    %54 = vector.broadcast %53 : vector<64x1xf32> to vector<64x128xf32>
    %55 = arith.mulf %54, %52 : vector<64x128xf32>
    %cst_15 = arith.constant dense<0.000000e+00> : vector<128xf32>
    %56 = vector.multi_reduction <add>, %55, %cst_15 [0] : vector<64x128xf32> to vector<128xf32>
    %57 = vector.shape_cast %56 : vector<128xf32> to vector<1x128xf32>
    %c0_16 = arith.constant 0 : index
    %c0_17 = arith.constant 0 : index
    %58 = vector.load %arg8[%c0_16, %c0_17] : memref<1x1xf32, #tpu.memory_space<vmem>>, vector<1x1xf32>
    %59 = vector.broadcast %58 : vector<1x1xf32> to vector<1x128xf32>
    %60 = arith.addf %57, %59 : vector<1x128xf32>
    %61 = arith.addf %12, %45 : vector<1x128xf32>
    %62 = arith.addf %61, %60 : vector<1x128xf32>
    %c0_18 = arith.constant 0 : index
    %c0_19 = arith.constant 0 : index
    %63 = vector.load %arg9[%c0_18, %c0_19] : memref<1x128xf32, #tpu.memory_space<vmem>>, vector<1x128xf32>
    tpu.vector_store %arg9[%c0_18, %c0_19], %62 {strides = array<i32>} : memref<1x128xf32, #tpu.memory_space<vmem>>, vector<1x128xf32>,
    return
  }
  func.func @transform_0(%arg0: i32) -> (i32, i32) {
    %c0_i32 = arith.constant 0 : i32
    %c0_i32_0 = arith.constant 0 : i32
    return %arg0, %c0_i32 : i32, i32
  }
  func.func @transform_1(%arg0: i32) -> i32 {
    %c0_i32 = arith.constant 0 : i32
    %c0_i32_0 = arith.constant 0 : i32
    return %c0_i32 : i32
  }
  func.func @transform_2(%arg0: i32) -> (i32, i32) {
    %c0_i32 = arith.constant 0 : i32
    %c0_i32_0 = arith.constant 0 : i32
    %c0_i32_1 = arith.constant 0 : i32
    return %c0_i32, %c0_i32_0 : i32, i32
  }
  func.func @transform_3(%arg0: i32) -> (i32, i32) {
    %c0_i32 = arith.constant 0 : i32
    %c0_i32_0 = arith.constant 0 : i32
    %c0_i32_1 = arith.constant 0 : i32
    return %c0_i32, %c0_i32_0 : i32, i32
  }
  func.func @transform_4(%arg0: i32) -> (i32, i32) {
    %c0_i32 = arith.constant 0 : i32
    %c0_i32_0 = arith.constant 0 : i32
    %c0_i32_1 = arith.constant 0 : i32
    return %c0_i32, %c0_i32_0 : i32, i32
  }
  func.func @transform_5(%arg0: i32) -> (i32, i32) {
    %c0_i32 = arith.constant 0 : i32
    %c0_i32_0 = arith.constant 0 : i32
    %c0_i32_1 = arith.constant 0 : i32
    return %c0_i32, %c0_i32_0 : i32, i32
  }
  func.func @transform_6(%arg0: i32) -> (i32, i32) {
    %c0_i32 = arith.constant 0 : i32
    %c0_i32_0 = arith.constant 0 : i32
    %c0_i32_1 = arith.constant 0 : i32
    return %c0_i32, %c0_i32_0 : i32, i32
  }
  func.func @transform_7(%arg0: i32) -> (i32, i32) {
    %c0_i32 = arith.constant 0 : i32
    %c0_i32_0 = arith.constant 0 : i32
    %c0_i32_1 = arith.constant 0 : i32
    return %c0_i32, %c0_i32_0 : i32, i32
  }
  func.func @transform_8(%arg0: i32) -> (i32, i32) {
    %c0_i32 = arith.constant 0 : i32
    %c0_i32_0 = arith.constant 0 : i32
    return %c0_i32, %arg0 : i32, i32
  }
}

</mosaic_0001>

<llo_original>
// kernel: cri_mlp_forward.1
$region0: #{cri_mlp_forward.1}
  #allocation0 [shape = 'u32[]', space=smem, size = 0x4, offset = 0x4, fixed_abs, tag = 'smem constant byte address 0x4 - core index']
  #allocation1 [shape = 'u32[144,128]{1,0:T(1,128)}', space=vmem, size = 0x12000, scoped, tag = 'internal scratch']
  #allocation2 [shape = 'f32[1,1]{1,0:T(1,128)S(1)}', space=vmem, size = 0x200, scoped, tag = 'scoped memory for cri_mlp_forward.1']
  %s0 = inlined_call_operand.vmem [shape: f32[300,48], index: 0, kind: input, shape index: {}]
  %s1 = inlined_call_operand.vmem [shape: f32[6], index: 1, kind: input, shape index: {}]
  %s2 = inlined_call_operand.vmem [shape: bf16[71,48], index: 2, kind: input, shape index: {}]
  %s3 = inlined_call_operand.vmem [shape: f32[71,1], index: 3, kind: input, shape index: {}]
  %s4 = inlined_call_operand.vmem [shape: bf16[64,64], index: 4, kind: input, shape index: {}]
  %s5 = inlined_call_operand.vmem [shape: f32[64,1], index: 5, kind: input, shape index: {}]
  %s6 = inlined_call_operand.vmem [shape: f32[64,1], index: 6, kind: input, shape index: {}]
  %s7 = inlined_call_operand.<no memory space> [shape: f32[1,1], index: 7, kind: input, shape index: {}]
  %s8 = inlined_call_operand.hbm [shape: f32[1,300], index: 8, kind: output, shape index: {}]
  %s9 = sld [smem:[#allocation0]]
  $region69: #{cri_mlp_forward.1} parent=0
    _
  %s11 = ssub.s32 1, %s9
  %s12 = scalar_select 0, %s11, %s9
  %v13 = vstv %s7
  %14 = vst [vmem:[#allocation2] sm:$0x1] %v13
  $region1: #{cri_mlp_forward.1} parent=0
    #allocation3 [shape = 'u8[512]{0}', space=smem, size = 0x200, scoped, tag = 'input window, operand 1, single buffered']
    #allocation4 [shape = 's32[2]{0}', space=sflag, size = 0x8, scoped, tag = 'scoped memory for cri_mlp_forward.1']
    #allocation5 [shape = 's32[2]{0}', space=sflag, size = 0x8, scoped, tag = 'scoped memory for cri_mlp_forward.1']
    #allocation6 [shape = 'u8[1024]{0}', space=vmem, size = 0x400, scoped, tag = 'output window, operand 0']
    %15 = vsyncpa [#allocation5], 0
    %16 = vsyncpa [#allocation4], 0
    %s17 = scalar_lea.sflag [#allocation4], 1
    %18 = vsyncpa %s17, 0
    loop: start=0, step=1, limit=5
    $region2: #{cri_mlp_forward.1} parent=1 // loop_pre_header
      _
    $region3: #{cri_mlp_forward.1} parent=1 // loop_header
      %s20 = sphi 0, %s24
      %p21 = scmp.ge.s32.totalorder %s20, 5
      %s30 = sphi 0, %s32
      %s33 = sphi 0, %s30
      %s34 = sphi 0, %s33
      %s50 = sphi 0, %s34
      %s54 = sphi 0, %s54
      %s56 = sphi 0, %s54
      %s57 = sphi 0, %s56
      %s71 = sphi 0, %s57
      %s75 = sphi 0, %s75
      %s77 = sphi 0, %s75
      %s78 = sphi 0, %s77
      %s92 = sphi 0, %s78
      %s96 = sphi 0, %s96
      %s98 = sphi 0, %s96
      %s99 = sphi 0, %s98
      %s113 = sphi 0, %s99
      %s117 = sphi 0, %s117
      %s119 = sphi 0, %s117
      %s120 = sphi 0, %s119
      %s134 = sphi 0, %s120
      %s138 = sphi 0, %s138
      %s140 = sphi 0, %s138
      %s141 = sphi 0, %s140
      %s155 = sphi 0, %s141
      %s159 = sphi 0, %s159
      %s161 = sphi 0, %s159
      %s162 = sphi 0, %s161
      %s176 = sphi 0, %s162
      %s180 = sphi 0, %s180
      %s182 = sphi 0, %s180
      %s183 = sphi 0, %s182
      %s197 = sphi 0, %s183
      %s203 = sphi 0, %s205
      %s206 = sphi 0, %s203
      %s207 = sphi 0, %s206
      %s223 = sphi 0, %s207
    $region4: #{cri_mlp_forward.1} parent=1 // loop_header_branch
      %23 = sbr.rel (%p21) target = $region8
    $region5: #{cri_mlp_forward.1} parent=1 // loop_body
      %s25 = ssub.s32 %s20, 1
      %s26 = ssub.s32 %s20, 2
      %s27 = sadd.s32 %s20, 1
      %s28 = ssub.s32 %s20, %s27
      %p29 = scmp.eq.s32.totalorder %s28, 0
      %s31 = sadd.s32 %s30, 1
      %s32 = scalar_select %p29, %s30, %s31
      %p35 = pneg %p29
      %p36 = scmp.eq.s32.totalorder %s20, 2
      %p37 = por %p35, %p36
      %p38 = scmp.ne.s32.totalorder %s30, %s33
      %p39 = scmp.eq.s32.totalorder %s20, 0
      %p40 = por %p38, %p39
      %p41 = scmp.ne.s32.totalorder %s30, %s33
      %p42 = scmp.eq.s32.totalorder %s25, 2
      %p43 = por %p41, %p42
      %p44 = scmp.ne.s32.totalorder %s33, %s34
      %p45 = scmp.eq.s32.totalorder %s25, 0
      %p46 = por %p44, %p45
      %p47 = scmp.ne.s32.totalorder %s33, %s34
      %p48 = scmp.eq.s32.totalorder %s26, 2
      %p49 = por %p47, %p48
      %p51 = scmp.ne.s32.totalorder %s34, %s50
      %p52 = scmp.eq.s32.totalorder %s26, 0
      %p53 = por %p51, %p52
      %s55 = sadd.s32 %s54, 1
      %p58 = scmp.eq.s32.totalorder %s20, 2
      %p59 = scmp.ne.s32.totalorder %s54, %s56
      %p60 = scmp.eq.s32.totalorder %s20, 0
      %p61 = por %p59, %p60
      %p62 = scmp.ne.s32.totalorder %s54, %s56
      %p63 = scmp.eq.s32.totalorder %s25, 2
      %p64 = por %p62, %p63
      %p65 = scmp.ne.s32.totalorder %s56, %s57
      %p66 = scmp.eq.s32.totalorder %s25, 0
      %p67 = por %p65, %p66
      %p68 = scmp.ne.s32.totalorder %s56, %s57
      %p69 = scmp.eq.s32.totalorder %s26, 2
      %p70 = por %p68, %p69
      %p72 = scmp.ne.s32.totalorder %s57, %s71
      %p73 = scmp.eq.s32.totalorder %s26, 0
      %p74 = por %p72, %p73
      %s76 = sadd.s32 %s75, 1
      %p79 = scmp.eq.s32.totalorder %s20, 2
      %p80 = scmp.ne.s32.totalorder %s75, %s77
      %p81 = scmp.eq.s32.totalorder %s20, 0
      %p82 = por %p80, %p81
      %p83 = scmp.ne.s32.totalorder %s75, %s77
      %p84 = scmp.eq.s32.totalorder %s25, 2
      %p85 = por %p83, %p84
      %p86 = scmp.ne.s32.totalorder %s77, %s78
      %p87 = scmp.eq.s32.totalorder %s25, 0
      %p88 = por %p86, %p87
      %p89 = scmp.ne.s32.totalorder %s77, %s78
      %p90 = scmp.eq.s32.totalorder %s26, 2
      %p91 = por %p89, %p90
      %p93 = scmp.ne.s32.totalorder %s78, %s92
      %p94 = scmp.eq.s32.totalorder %s26, 0
      %p95 = por %p93, %p94
      %s97 = sadd.s32 %s96, 1
      %p100 = scmp.eq.s32.totalorder %s20, 2
      %p101 = scmp.ne.s32.totalorder %s96, %s98
      %p102 = scmp.eq.s32.totalorder %s20, 0
      %p103 = por %p101, %p102
      %p104 = scmp.ne.s32.totalorder %s96, %s98
      %p105 = scmp.eq.s32.totalorder %s25, 2
      %p106 = por %p104, %p105
      %p107 = scmp.ne.s32.totalorder %s98, %s99
      %p108 = scmp.eq.s32.totalorder %s25, 0
      %p109 = por %p107, %p108
      %p110 = scmp.ne.s32.totalorder %s98, %s99
      %p111 = scmp.eq.s32.totalorder %s26, 2
      %p112 = por %p110, %p111
      %p114 = scmp.ne.s32.totalorder %s99, %s113
      %p115 = scmp.eq.s32.totalorder %s26, 0
      %p116 = por %p114, %p115
      %s118 = sadd.s32 %s117, 1
      %p121 = scmp.eq.s32.totalorder %s20, 2
      %p122 = scmp.ne.s32.totalorder %s117, %s119
      %p123 = scmp.eq.s32.totalorder %s20, 0
      %p124 = por %p122, %p123
      %p125 = scmp.ne.s32.totalorder %s117, %s119
      %p126 = scmp.eq.s32.totalorder %s25, 2
      %p127 = por %p125, %p126
      %p128 = scmp.ne.s32.totalorder %s119, %s120
      %p129 = scmp.eq.s32.totalorder %s25, 0
      %p130 = por %p128, %p129
      %p131 = scmp.ne.s32.totalorder %s119, %s120
      %p132 = scmp.eq.s32.totalorder %s26, 2
      %p133 = por %p131, %p132
      %p135 = scmp.ne.s32.totalorder %s120, %s134
      %p136 = scmp.eq.s32.totalorder %s26, 0
      %p137 = por %p135, %p136
      %s139 = sadd.s32 %s138, 1
      %p142 = scmp.eq.s32.totalorder %s20, 2
      %p143 = scmp.ne.s32.totalorder %s138, %s140
      %p144 = scmp.eq.s32.totalorder %s20, 0
      %p145 = por %p143, %p144
      %p146 = scmp.ne.s32.totalorder %s138, %s140
      %p147 = scmp.eq.s32.totalorder %s25, 2
      %p148 = por %p146, %p147
      %p149 = scmp.ne.s32.totalorder %s140, %s141
      %p150 = scmp.eq.s32.totalorder %s25, 0
      %p151 = por %p149, %p150
      %p152 = scmp.ne.s32.totalorder %s140, %s141
      %p153 = scmp.eq.s32.totalorder %s26, 2
      %p154 = por %p152, %p153
      %p156 = scmp.ne.s32.totalorder %s141, %s155
      %p157 = scmp.eq.s32.totalorder %s26, 0
      %p158 = por %p156, %p157
      %s160 = sadd.s32 %s159, 1
      %p163 = scmp.eq.s32.totalorder %s20, 2
      %p164 = scmp.ne.s32.totalorder %s159, %s161
      %p165 = scmp.eq.s32.totalorder %s20, 0
      %p166 = por %p164, %p165
      %p167 = scmp.ne.s32.totalorder %s159, %s161
      %p168 = scmp.eq.s32.totalorder %s25, 2
      %p169 = por %p167, %p168
      %p170 = scmp.ne.s32.totalorder %s161, %s162
      %p171 = scmp.eq.s32.totalorder %s25, 0
      %p172 = por %p170, %p171
      %p173 = scmp.ne.s32.totalorder %s161, %s162
      %p174 = scmp.eq.s32.totalorder %s26, 2
      %p175 = por %p173, %p174
      %p177 = scmp.ne.s32.totalorder %s162, %s176
      %p178 = scmp.eq.s32.totalorder %s26, 0
      %p179 = por %p177, %p178
      %s181 = sadd.s32 %s180, 1
      %p184 = scmp.eq.s32.totalorder %s20, 2
      %p185 = scmp.ne.s32.totalorder %s180, %s182
      %p186 = scmp.eq.s32.totalorder %s20, 0
      %p187 = por %p185, %p186
      %p188 = scmp.ne.s32.totalorder %s180, %s182
      %p189 = scmp.eq.s32.totalorder %s25, 2
      %p190 = por %p188, %p189
      %p191 = scmp.ne.s32.totalorder %s182, %s183
      %p192 = scmp.eq.s32.totalorder %s25, 0
      %p193 = por %p191, %p192
      %p194 = scmp.ne.s32.totalorder %s182, %s183
      %p195 = scmp.eq.s32.totalorder %s26, 2
      %p196 = por %p194, %p195
      %p198 = scmp.ne.s32.totalorder %s183, %s197
      %p199 = scmp.eq.s32.totalorder %s26, 0
      %p200 = por %p198, %p199
      %s201 = ssub.s32 %s20, %s27
      %p202 = scmp.eq.s32.totalorder %s201, 0
      %s204 = sadd.s32 %s203, 1
      %s205 = scalar_select %p202, %s203, %s204
      %p208 = pneg %p202
      %p209 = scmp.eq.s32.totalorder %s20, 2
      %p210 = por %p208, %p209
      %p211 = scmp.ne.s32.totalorder %s203, %s206
      %p212 = scmp.eq.s32.totalorder %s20, 0
      %p213 = por %p211, %p212
      %p214 = scmp.ne.s32.totalorder %s203, %s206
      %p215 = scmp.eq.s32.totalorder %s25, 2
      %p216 = por %p214, %p215
      %p217 = scmp.ne.s32.totalorder %s206, %s207
      %p218 = scmp.eq.s32.totalorder %s25, 0
      %p219 = por %p217, %p218
      %p220 = scmp.ne.s32.totalorder %s206, %s207
      %p221 = scmp.eq.s32.totalorder %s26, 2
      %p222 = por %p220, %p221
      %p224 = scmp.ne.s32.totalorder %s207, %s223
      %p225 = scmp.eq.s32.totalorder %s26, 0
      %p226 = por %p224, %p225
      %p227 = scmp.le.s32.totalorder 1, %s20
      %p228 = scmp.lt.s32.totalorder %s20, 4
      %p229 = pnand %p227, %p228
      %p230 = pneg %p229
      // Predicated region
      $region9: #{cri_mlp_forward.1} parent=5 // pred_check
        _
      $region10: #{cri_mlp_forward.1} parent=5 // pred_check_branch
        %232 = sbr.rel (%p229) target = $region12
      $region11: #{cri_mlp_forward.1} parent=5 // pred_region
        %s233 = ssub.s32 %s20, 1
        // Predicated region
        $region13: #{cri_mlp_forward.1} parent=11 // pred_check
          %p234 = pneg %p67
        $region14: #{cri_mlp_forward.1} parent=11 // pred_check_branch
          %236 = sbr.rel (%p234) target = $region16
        $region15: #{cri_mlp_forward.1} parent=11 // pred_region
          %s238 = ssub.s32 16, 16
          %239 = vsyncadd [#allocation5], %s238
          %s241 = sshll.u32 %s1, 4
          %s242 = int_to_ptr.vmem [resolvable:$true] %s241
          %244 = dma.vmem_to_smem %s242, 16, [#allocation3], [#allocation5]
        $region16: #{cri_mlp_forward.1} parent=11 // pred_fallthru
          _
        // Predicated region
        $region17: #{cri_mlp_forward.1} parent=11 // pred_check
          %p245 = pneg %p88
        $region18: #{cri_mlp_forward.1} parent=11 // pred_check_branch
          %247 = sbr.rel (%p245) target = $region20
        $region19: #{cri_mlp_forward.1} parent=11 // pred_region
          _
        $region20: #{cri_mlp_forward.1} parent=11 // pred_fallthru
          _
        // Predicated region
        $region21: #{cri_mlp_forward.1} parent=11 // pred_check
          %p248 = pneg %p109
        $region22: #{cri_mlp_forward.1} parent=11 // pred_check_branch
          %250 = sbr.rel (%p248) target = $region24
        $region23: #{cri_mlp_forward.1} parent=11 // pred_region
          _
        $region24: #{cri_mlp_forward.1} parent=11 // pred_fallthru
          _
        // Predicated region
        $region25: #{cri_mlp_forward.1} parent=11 // pred_check
          %p251 = pneg %p130
        $region26: #{cri_mlp_forward.1} parent=11 // pred_check_branch
          %253 = sbr.rel (%p251) target = $region28
        $region27: #{cri_mlp_forward.1} parent=11 // pred_region
          _
        $region28: #{cri_mlp_forward.1} parent=11 // pred_fallthru
          _
        // Predicated region
        $region29: #{cri_mlp_forward.1} parent=11 // pred_check
          %p254 = pneg %p151
        $region30: #{cri_mlp_forward.1} parent=11 // pred_check_branch
          %256 = sbr.rel (%p254) target = $region32
        $region31: #{cri_mlp_forward.1} parent=11 // pred_region
          _
        $region32: #{cri_mlp_forward.1} parent=11 // pred_fallthru
          _
        // Predicated region
        $region33: #{cri_mlp_forward.1} parent=11 // pred_check
          %p257 = pneg %p172
        $region34: #{cri_mlp_forward.1} parent=11 // pred_check_branch
          %259 = sbr.rel (%p257) target = $region36
        $region35: #{cri_mlp_forward.1} parent=11 // pred_region
          _
        $region36: #{cri_mlp_forward.1} parent=11 // pred_fallthru
          _
        // Predicated region
        $region37: #{cri_mlp_forward.1} parent=11 // pred_check
          %p260 = pneg %p193
        $region38: #{cri_mlp_forward.1} parent=11 // pred_check_branch
          %262 = sbr.rel (%p260) target = $region40
        $region39: #{cri_mlp_forward.1} parent=11 // pred_region
          _
        $region40: #{cri_mlp_forward.1} parent=11 // pred_fallthru
          _
      $region12: #{cri_mlp_forward.1} parent=5 // pred_fallthru
        _
      %p263 = scmp.lt.s32.totalorder %s20, 3
      // Predicated region
      $region41: #{cri_mlp_forward.1} parent=5 // pred_check
        %p264 = pneg %p263
      $region42: #{cri_mlp_forward.1} parent=5 // pred_check_branch
        %266 = sbr.rel (%p264) target = $region44
      $region43: #{cri_mlp_forward.1} parent=5 // pred_region
        // Predicated region
        $region45: #{cri_mlp_forward.1} parent=43 // pred_check
          %p267 = pneg %p40
        $region46: #{cri_mlp_forward.1} parent=43 // pred_check_branch
          %269 = sbr.rel (%p267) target = $region48
        $region47: #{cri_mlp_forward.1} parent=43 // pred_region
          %s270 = smul.u32 16, %s20
          %s271 = ssub.s32 38, %s270
          %p272 = scmp.lt.s32.totalorder %s271, 16
          %s273 = scalar_select %p272, %s271, 16
          %s274 = smul.u32 128, %s273
          %p275 = scmp.lt.s32.totalorder %s270, 37
          %s276 = scalar_select %p275, %s270, 37
          %s277 = smul.addr %s276, 8
          %s278 = scalar_lea.vmem %s0, %s277
          %s279 = smul.u32 16, %s20
          %s280 = ssub.s32 38, %s279
          %p281 = scmp.lt.s32.totalorder %s280, 16
          %s282 = scalar_select %p281, %s280, 16
          %s283 = smul.u32 128, %s282
        $region48: #{cri_mlp_forward.1} parent=43 // pred_fallthru
          _
      $region44: #{cri_mlp_forward.1} parent=5 // pred_fallthru
        _
      %p284 = scmp.le.s32.totalorder 1, %s20
      %p285 = scmp.lt.s32.totalorder %s20, 4
      %p286 = pnand %p284, %p285
      %p287 = pneg %p286
      // Predicated region
      $region49: #{cri_mlp_forward.1} parent=5 // pred_check
        _
      $region50: #{cri_mlp_forward.1} parent=5 // pred_check_branch
        %289 = sbr.rel (%p286) target = $region52
      $region51: #{cri_mlp_forward.1} parent=5 // pred_region
        %s290 = ssub.s32 %s20, 1
        // Predicated region
        $region53: #{cri_mlp_forward.1} parent=51 // pred_check
          %p291 = pneg %p67
        $region54: #{cri_mlp_forward.1} parent=51 // pred_check_branch
          %293 = sbr.rel (%p291) target = $region56
        $region55: #{cri_mlp_forward.1} parent=51 // pred_region
          %294 = dma.done [#allocation5], 16
        $region56: #{cri_mlp_forward.1} parent=51 // pred_fallthru
          _
        %295 = sfence
        %s296 = smul.u32 16, %s25
        %s297 = ssub.s32 38, %s296
        %p298 = scmp.lt.s32.totalorder %s297, 16
        %s299 = scalar_select %p298, %s297, 16
        %s300 = smul.u32 128, %s299
        %p301 = scmp.lt.s32.totalorder %s296, 37
        %s302 = scalar_select %p301, %s296, 37
        %s303 = smul.addr %s302, 8
        %s304 = scalar_lea.vmem %s0, %s303
        %p305 = pneg %p46
        %p306 = pneg %p43
        %p307 = pneg %p67
        %p308 = pneg %p64
        %p309 = pneg %p88
        %p310 = pneg %p85
        %p311 = pneg %p109
        %p312 = pneg %p106
        %p313 = pneg %p130
        %p314 = pneg %p127
        %p315 = pneg %p151
        %p316 = pneg %p148
        %p317 = pneg %p172
        %p318 = pneg %p169
        %p319 = pneg %p193
        %p320 = pneg %p190
        %p321 = pneg %p219
        %p322 = pneg %p216
        %s323 = sand.u32 %s206, 1
        %s324 = scalar_lea.sflag [#allocation4], %s323
        %s325 = sand.u32 %s206, 1
        %s326 = scalar_lea.vmem [#allocation6], %s325
        %s327 = smul.u32 16, %s25
        %s328 = ssub.s32 38, %s327
        %p329 = scmp.lt.s32.totalorder %s328, 16
        %s330 = scalar_select %p329, %s328, 16
        %s331 = smul.u32 128, %s330
        %p332 = scmp.lt.s32.totalorder %s327, 37
        %s333 = scalar_select %p332, %s327, 37
        %s334 = smul.addr %s333, 8
        %s335 = scalar_lea.vmem %s0, %s334
        %s336 = smul.u32 16, %s25
        %s337 = ssub.s32 38, %s336
        %p338 = scmp.lt.s32.totalorder %s337, 16
        %s339 = scalar_select %p338, %s337, 16
        %s340 = smul.u32 128, %s339
        %v342 = vld [vmem:[%s335] sm:$0xff]
        %v343 = vld [vmem:[%s335 + $0x8] sm:$0xff]
        %v344 = vld [vmem:[%s335 + $0x10] sm:$0xff]
        %v345 = vld [vmem:[%s335 + $0x18] sm:$0xff]
        %v346 = vld [vmem:[%s335 + $0x20] sm:$0xff]
        %v347 = vld [vmem:[%s335 + $0x28] sm:$0xff]
        %v348 = vld [vmem:[%s335 + $0x30] sm:$0xff]
        %v349 = vld [vmem:[%s335 + $0x38] sm:$0xff]
        %v350 = vld [vmem:[%s335 + $0x40] sm:$0xff]
        %v351 = vld [vmem:[%s335 + $0x48] sm:$0xff]
        %v352 = vld [vmem:[%s335 + $0x50] sm:$0xff]
        %v353 = vld [vmem:[%s335 + $0x58] sm:$0xff]
        %v354 = vld [vmem:[%s335 + $0x60] sm:$0xff]
        %v355 = vld [vmem:[%s335 + $0x68] sm:$0xff]
        %v356 = vld [vmem:[%s335 + $0x70] sm:$0xff]
        %v357 = vld [vmem:[%s335 + $0x78] sm:$0xff]
        %v358 = vpack.c.bf16 %v343, %v342
        %v359 = vpack.c.bf16 %v345, %v344
        %v360 = vpack.c.bf16 %v347, %v346
        %v361 = vpack.c.bf16 %v349, %v348
        %v362 = vpack.c.bf16 %v351, %v350
        %v363 = vpack.c.bf16 %v353, %v352
        %v364 = vpack.c.bf16 %v355, %v354
        %v365 = vpack.c.bf16 %v357, %v356
        %v366 = vld [vmem:[%s2] sm:$0xf]
        %v367 = vld [vmem:[%s2 + $0x4] sm:$0xf]
        %v368 = vld [vmem:[%s2 + $0x8] sm:$0xf]
        %v369 = vld [vmem:[%s2 + $0xc] sm:$0xf]
        %v370 = vld [vmem:[%s2 + $0x10] sm:$0xf]
        %v371 = vld [vmem:[%s2 + $0x14] sm:$0xf]
        %v372 = vld [vmem:[%s2 + $0x18] sm:$0xf]
        %v373 = vld [vmem:[%s2 + $0x1c] sm:$0xf]
        %v374 = vld [vmem:[%s2 + $0x20] sm:$0xf]
        %v375 = vld [vmem:[%s3] sm:$0xff]
        %v376 = vld [vmem:[%s3 + $0x8] sm:$0xff]
        %v377 = vld [vmem:[%s3 + $0x10] sm:$0xff]
        %v378 = vld [vmem:[%s3 + $0x18] sm:$0xff]
        %v379 = vld [vmem:[%s3 + $0x20] sm:$0xff]
        %v380 = vld [vmem:[%s3 + $0x28] sm:$0xff]
        %v381 = vld [vmem:[%s3 + $0x30] sm:$0xff]
        %v382 = vld [vmem:[%s3 + $0x38] sm:$0xff]
        %v383 = vld [vmem:[%s3 + $0x40] sm:$0x7f]
        %385 = vset.pattern.permute.xlu0 0
        %386 = vperm.xlu0 %385, %v375
        %v387 = vpop.permute.xlu0 %386
        %390 = vset.pattern.permute.xlu0 0
        %391 = vperm.xlu0 %390, %v376
        %v392 = vpop.permute.xlu0 %391
        %395 = vset.pattern.permute.xlu0 0
        %396 = vperm.xlu0 %395, %v377
        %v397 = vpop.permute.xlu0 %396
        %400 = vset.pattern.permute.xlu0 0
        %401 = vperm.xlu0 %400, %v378
        %v402 = vpop.permute.xlu0 %401
        %405 = vset.pattern.permute.xlu0 0
        %406 = vperm.xlu0 %405, %v379
        %v407 = vpop.permute.xlu0 %406
        %410 = vset.pattern.permute.xlu0 0
        %411 = vperm.xlu0 %410, %v380
        %v412 = vpop.permute.xlu0 %411
        %415 = vset.pattern.permute.xlu0 0
        %416 = vperm.xlu0 %415, %v381
        %v417 = vpop.permute.xlu0 %416
        %420 = vset.pattern.permute.xlu0 0
        %421 = vperm.xlu0 %420, %v382
        %v422 = vpop.permute.xlu0 %421
        %425 = vset.pattern.permute.xlu0 0
        %426 = vperm.xlu0 %425, %v383
        %v427 = vpop.permute.xlu0 %426
        %v438 = vunpack.c.l.b16 %v366
        %v439 = vunpack.c.l.b16 %v367
        %v440 = vunpack.c.l.b16 %v368
        %v441 = vunpack.c.l.b16 %v369
        %v442 = vunpack.c.l.b16 %v370
        %v443 = vunpack.c.l.b16 %v371
        %v444 = vunpack.c.l.b16 %v372
        %v445 = vunpack.c.l.b16 %v373
        %v446 = vunpack.c.l.b16 %v374
        %v447 = vpack.c.b16 %v439, %v438
        %v448 = vpack.c.b16 %v441, %v440
        %v449 = vpack.c.b16 %v443, %v442
        %v450 = vpack.c.b16 %v445, %v444
        %v451 = vpack.c.b16 %v446, %v446
        %vm452 = vcmask 392192
        %v454 = vsel %vm452, %v447, 0
        %v457 = vsel %vm452, %v448, 0
        %v460 = vsel %vm452, %v449, 0
        %v463 = vsel %vm452, %v450, 0
        %v466 = vsel %vm452, %v451, 0
        %v469 = vsel %vm452, %v358, 0
        %v472 = vsel %vm452, %v359, 0
        %v475 = vsel %vm452, %v360, 0
        %v478 = vsel %vm452, %v361, 0
        %v481 = vsel %vm452, %v362, 0
        %v484 = vsel %vm452, %v363, 0
        %v487 = vsel %vm452, %v364, 0
        %v490 = vsel %vm452, %v365, 0
        %492 = vmatprep.subr.bf16.mxu0 0
        %493 = vmatpush1.bf16.xpose.msra.mxu0 %v469
        %494 = vmatprep.subr.bf16.mxu0 0
        %495 = vmatpush1.bf16.xpose.msra.mxu0 %v472
        %496 = vmatprep.subr.bf16.mxu0 0
        %497 = vmatpush1.bf16.xpose.msra.mxu0 %v475
        %498 = vmatprep.subr.bf16.mxu0 0
        %499 = vmatpush1.bf16.xpose.msra.mxu0 %v478
        %500 = vmatprep.subr.bf16.mxu0 0
        %501 = vmatpush1.bf16.xpose.msra.mxu0 %v481
        %502 = vmatprep.subr.bf16.mxu0 0
        %503 = vmatpush1.bf16.xpose.msra.mxu0 %v484
        %504 = vmatprep.subr.bf16.mxu0 0
        %505 = vmatpush1.bf16.xpose.msra.mxu0 %v487
        %506 = vmatprep.subr.bf16.mxu0 0
        %507 = vmatpush1.bf16.xpose.msra.mxu0 %v490
        %508 = vmatprep.subr.bf16.mxu0 0
        %509 = vmatpush1.bf16.xpose.msra.mxu0 0
        %510 = vmatprep.subr.bf16.mxu0 0
        %511 = vmatpush1.bf16.xpose.msra.mxu0 0
        %512 = vmatprep.subr.bf16.mxu0 0
        %513 = vmatpush1.bf16.xpose.msra.mxu0 0
        %514 = vmatprep.subr.bf16.mxu0 0
        %515 = vmatpush1.bf16.xpose.msra.mxu0 0
        %516 = vmatprep.subr.bf16.mxu0 0
        %517 = vmatpush1.bf16.xpose.msra.mxu0 0
        %518 = vmatprep.subr.bf16.mxu0 0
        %519 = vmatpush1.bf16.xpose.msra.mxu0 0
        %520 = vmatprep.subr.bf16.mxu0 0
        %521 = vmatpush1.bf16.xpose.msra.mxu0 0
        %522 = vmatprep.subr.bf16.mxu0 0
        %523 = vmatpush1.bf16.xpose.msra.mxu0 0
        %524 = vmatprep.mubr.bf16.mxu0 0
        %525 = vmatmul.mubr.bf16.gmra.mrb[0].mxu0 %v454
        %v526 = vpop.f32.mrb[0].mxu0
        %v527 = vadd.f32 %v387, %v526
        %v528 = vpop.f32.mrb[0].mxu0
        %v529 = vpop.f32.mrb[0].mxu0
        %v530 = vadd.f32 %v392, %v529
        %v531 = vpop.f32.mrb[0].mxu0
        %532 = vmatprep.mubr.bf16.mxu0 0
        %533 = vmatmul.mubr.bf16.gmra.mrb[0].mxu0 %v457
        %v534 = vpop.f32.mrb[0].mxu0
        %v535 = vadd.f32 %v397, %v534
        %v536 = vpop.f32.mrb[0].mxu0
        %v537 = vpop.f32.mrb[0].mxu0
        %v538 = vadd.f32 %v402, %v537
        %v539 = vpop.f32.mrb[0].mxu0
        %540 = vmatprep.mubr.bf16.mxu0 0
        %541 = vmatmul.mubr.bf16.gmra.mrb[0].mxu0 %v460
        %v542 = vpop.f32.mrb[0].mxu0
        %v543 = vadd.f32 %v407, %v542
        %v544 = vpop.f32.mrb[0].mxu0
        %v545 = vpop.f32.mrb[0].mxu0
        %v546 = vadd.f32 %v412, %v545
        %v547 = vpop.f32.mrb[0].mxu0
        %548 = vmatprep.mubr.bf16.mxu0 0
        %549 = vmatmul.mubr.bf16.gmra.mrb[0].mxu0 %v463
        %v550 = vpop.f32.mrb[0].mxu0
        %v551 = vadd.f32 %v417, %v550
        %v552 = vpop.f32.mrb[0].mxu0
        %v553 = vpop.f32.mrb[0].mxu0
        %v554 = vadd.f32 %v422, %v553
        %v555 = vpop.f32.mrb[0].mxu0
        %556 = vmatprep.mubr.bf16.mxu0 0
        %557 = vmatmul.mubr.bf16.gmra.mrb[0].mxu0 %v466
        %v558 = vpop.f32.mrb[0].mxu0
        %v559 = vadd.f32 %v427, %v558
        %v560 = vpop.f32.mrb[0].mxu0
        %v561 = vpop.f32.mrb[0].mxu0
        %v562 = vpop.f32.mrb[0].mxu0
        %563 = vdwg.mxu0
        %v564 = vmax.f32 %v527, 0.0
        %v565 = vmax.f32 %v530, 0.0
        %v566 = vmax.f32 %v535, 0.0
        %v567 = vmax.f32 %v538, 0.0
        %v568 = vmax.f32 %v543, 0.0
        %v569 = vmax.f32 %v546, 0.0
        %v570 = vmax.f32 %v551, 0.0
        %v571 = vmax.f32 %v554, 0.0
        %v572 = vpack.c.bf16 %v565, %v564
        %v573 = vpack.c.bf16 %v567, %v566
        %v574 = vpack.c.bf16 %v569, %v568
        %v575 = vpack.c.bf16 %v571, %v570
        %v576 = vmul.f32 %v559, %v559
        %v578 = vrot.slane %v576, 1
        %v580 = vadd.f32 %v576, %v578
        %s581 = sld [smem:[#allocation3]]
        %v582 = vstv %s581
        %v583 = vmul.f32 %v580, %v582
        %v584 = vmul.f32 %v583, 1.442695
        %v585 = vpow.pop %v584
        %s586 = sld [smem:[#allocation3 + $0x1]]
        %v587 = vstv %s586
        %v588 = vmul.f32 %v580, %v587
        %v589 = vmul.f32 %v588, 1.442695
        %v590 = vpow.pop %v589
        %s591 = sld [smem:[#allocation3 + $0x2]]
        %v592 = vstv %s591
        %v593 = vmul.f32 %v580, %v592
        %v594 = vmul.f32 %v593, 1.442695
        %v595 = vpow.pop %v594
        %s596 = sld [smem:[#allocation3 + $0x3]]
        %v597 = vstv %s596
        %v598 = vmul.f32 %v585, %v597
        %s599 = sld [smem:[#allocation3 + $0x4]]
        %v600 = vstv %s599
        %v601 = vmul.f32 %v590, %v600
        %v603 = vrot.slane %v601, 2
        %v605 = vadd.f32 %v598, %v603
        %s606 = sld [smem:[#allocation3 + $0x5]]
        %v607 = vstv %s606
        %v608 = vmul.f32 %v595, %v607
        %v610 = vrot.slane %v608, 4
        %v612 = vadd.f32 %v605, %v610
        %v613 = vld [vmem:[%s4] sm:$0xf]
        %v614 = vld [vmem:[%s4 + $0x4] sm:$0xf]
        %v615 = vld [vmem:[%s4 + $0x8] sm:$0xf]
        %v616 = vld [vmem:[%s4 + $0xc] sm:$0xf]
        %v617 = vld [vmem:[%s4 + $0x10] sm:$0xf]
        %v618 = vld [vmem:[%s4 + $0x14] sm:$0xf]
        %v619 = vld [vmem:[%s4 + $0x18] sm:$0xf]
        %v620 = vld [vmem:[%s4 + $0x1c] sm:$0xf]
        %v621 = vld [vmem:[%s5] sm:$0xff]
        %v622 = vld [vmem:[%s5 + $0x8] sm:$0xff]
        %v623 = vld [vmem:[%s5 + $0x10] sm:$0xff]
        %v624 = vld [vmem:[%s5 + $0x18] sm:$0xff]
        %v625 = vld [vmem:[%s5 + $0x20] sm:$0xff]
        %v626 = vld [vmem:[%s5 + $0x28] sm:$0xff]
        %v627 = vld [vmem:[%s5 + $0x30] sm:$0xff]
        %v628 = vld [vmem:[%s5 + $0x38] sm:$0xff]
        %630 = vset.pattern.permute.xlu0 0
        %631 = vperm.xlu0 %630, %v621
        %v632 = vpop.permute.xlu0 %631
        %635 = vset.pattern.permute.xlu0 0
        %636 = vperm.xlu0 %635, %v622
        %v637 = vpop.permute.xlu0 %636
        %640 = vset.pattern.permute.xlu0 0
        %641 = vperm.xlu0 %640, %v623
        %v642 = vpop.permute.xlu0 %641
        %645 = vset.pattern.permute.xlu0 0
        %646 = vperm.xlu0 %645, %v624
        %v647 = vpop.permute.xlu0 %646
        %650 = vset.pattern.permute.xlu0 0
        %651 = vperm.xlu0 %650, %v625
        %v652 = vpop.permute.xlu0 %651
        %655 = vset.pattern.permute.xlu0 0
        %656 = vperm.xlu0 %655, %v626
        %v657 = vpop.permute.xlu0 %656
        %660 = vset.pattern.permute.xlu0 0
        %661 = vperm.xlu0 %660, %v627
        %v662 = vpop.permute.xlu0 %661
        %665 = vset.pattern.permute.xlu0 0
        %666 = vperm.xlu0 %665, %v628
        %v667 = vpop.permute.xlu0 %666
        %v677 = vunpack.c.l.b16 %v613
        %v678 = vunpack.c.l.b16 %v614
        %v679 = vunpack.c.l.b16 %v615
        %v680 = vunpack.c.l.b16 %v616
        %v681 = vunpack.c.l.b16 %v617
        %v682 = vunpack.c.l.b16 %v618
        %v683 = vunpack.c.l.b16 %v619
        %v684 = vunpack.c.l.b16 %v620
        %v685 = vpack.c.b16 %v678, %v677
        %v686 = vpack.c.b16 %v680, %v679
        %v687 = vpack.c.b16 %v682, %v681
        %v688 = vpack.c.b16 %v684, %v683
        %vm689 = vcmask 523264
        %v691 = vsel %vm689, %v685, 0
        %v694 = vsel %vm689, %v686, 0
        %v697 = vsel %vm689, %v687, 0
        %v700 = vsel %vm689, %v688, 0
        %702 = vmatprep.subr.bf16.mxu0 0
        %703 = vmatpush1.bf16.msra.mxu0 %v572
        %704 = vmatprep.subr.bf16.mxu0 0
        %705 = vmatpush1.bf16.msra.mxu0 %v573
        %706 = vmatprep.subr.bf16.mxu0 0
        %707 = vmatpush1.bf16.msra.mxu0 %v574
        %708 = vmatprep.subr.bf16.mxu0 0
        %709 = vmatpush1.bf16.msra.mxu0 %v575
        %710 = vmatprep.subr.bf16.mxu0 0
        %711 = vmatpush1.bf16.msra.mxu0 0
        %712 = vmatprep.subr.bf16.mxu0 0
        %713 = vmatpush1.bf16.msra.mxu0 0
        %714 = vmatprep.subr.bf16.mxu0 0
        %715 = vmatpush1.bf16.msra.mxu0 0
        %716 = vmatprep.subr.bf16.mxu0 0
        %717 = vmatpush1.bf16.msra.mxu0 0
        %718 = vmatprep.subr.bf16.mxu0 0
        %719 = vmatpush1.bf16.msra.mxu0 0
        %720 = vmatprep.subr.bf16.mxu0 0
        %721 = vmatpush1.bf16.msra.mxu0 0
        %722 = vmatprep.subr.bf16.mxu0 0
        %723 = vmatpush1.bf16.msra.mxu0 0
        %724 = vmatprep.subr.bf16.mxu0 0
        %725 = vmatpush1.bf16.msra.mxu0 0
        %726 = vmatprep.subr.bf16.mxu0 0
        %727 = vmatpush1.bf16.msra.mxu0 0
        %728 = vmatprep.subr.bf16.mxu0 0
        %729 = vmatpush1.bf16.msra.mxu0 0
        %730 = vmatprep.subr.bf16.mxu0 0
        %731 = vmatpush1.bf16.msra.mxu0 0
        %732 = vmatprep.subr.bf16.mxu0 0
        %733 = vmatpush1.bf16.msra.mxu0 0
        %734 = vmatprep.mubr.bf16.mxu0 0
        %735 = vmatmul.mubr.bf16.gmra.mrb[0].mxu0 %v691
        %v736 = vpop.f32.mrb[0].mxu0
        %v737 = vadd.f32 %v632, %v736
        %v738 = vpop.f32.mrb[0].mxu0
        %v739 = vpop.f32.mrb[0].mxu0
        %v740 = vadd.f32 %v637, %v739
        %v741 = vpop.f32.mrb[0].mxu0
        %742 = vmatprep.mubr.bf16.mxu0 0
        %743 = vmatmul.mubr.bf16.gmra.mrb[0].mxu0 %v694
        %v744 = vpop.f32.mrb[0].mxu0
        %v745 = vadd.f32 %v642, %v744
        %v746 = vpop.f32.mrb[0].mxu0
        %v747 = vpop.f32.mrb[0].mxu0
        %v748 = vadd.f32 %v647, %v747
        %v749 = vpop.f32.mrb[0].mxu0
        %750 = vmatprep.mubr.bf16.mxu0 0
        %751 = vmatmul.mubr.bf16.gmra.mrb[0].mxu0 %v697
        %v752 = vpop.f32.mrb[0].mxu0
        %v753 = vadd.f32 %v652, %v752
        %v754 = vpop.f32.mrb[0].mxu0
        %v755 = vpop.f32.mrb[0].mxu0
        %v756 = vadd.f32 %v657, %v755
        %v757 = vpop.f32.mrb[0].mxu0
        %758 = vmatprep.mubr.bf16.mxu0 0
        %759 = vmatmul.mubr.bf16.gmra.mrb[0].mxu0 %v700
        %v760 = vpop.f32.mrb[0].mxu0
        %v761 = vadd.f32 %v662, %v760
        %v762 = vpop.f32.mrb[0].mxu0
        %v763 = vpop.f32.mrb[0].mxu0
        %v764 = vadd.f32 %v667, %v763
        %v765 = vpop.f32.mrb[0].mxu0
        %766 = vdwg.mxu0
        %v767 = vmax.f32 %v737, 0.0
        %v768 = vmax.f32 %v740, 0.0
        %v769 = vmax.f32 %v745, 0.0
        %v770 = vmax.f32 %v748, 0.0
        %v771 = vmax.f32 %v753, 0.0
        %v772 = vmax.f32 %v756, 0.0
        %v773 = vmax.f32 %v761, 0.0
        %v774 = vmax.f32 %v764, 0.0
        %v775 = vld [vmem:[%s6] sm:$0xff]
        %v776 = vld [vmem:[%s6 + $0x8] sm:$0xff]
        %v777 = vld [vmem:[%s6 + $0x10] sm:$0xff]
        %v778 = vld [vmem:[%s6 + $0x18] sm:$0xff]
        %v779 = vld [vmem:[%s6 + $0x20] sm:$0xff]
        %v780 = vld [vmem:[%s6 + $0x28] sm:$0xff]
        %v781 = vld [vmem:[%s6 + $0x30] sm:$0xff]
        %v782 = vld [vmem:[%s6 + $0x38] sm:$0xff]
        %784 = vset.pattern.permute.xlu0 0
        %785 = vperm.xlu0 %784, %v775
        %v786 = vpop.permute.xlu0 %785
        %789 = vset.pattern.permute.xlu0 0
        %790 = vperm.xlu0 %789, %v776
        %v791 = vpop.permute.xlu0 %790
        %794 = vset.pattern.permute.xlu0 0
        %795 = vperm.xlu0 %794, %v777
        %v796 = vpop.permute.xlu0 %795
        %799 = vset.pattern.permute.xlu0 0
        %800 = vperm.xlu0 %799, %v778
        %v801 = vpop.permute.xlu0 %800
        %804 = vset.pattern.permute.xlu0 0
        %805 = vperm.xlu0 %804, %v779
        %v806 = vpop.permute.xlu0 %805
        %809 = vset.pattern.permute.xlu0 0
        %810 = vperm.xlu0 %809, %v780
        %v811 = vpop.permute.xlu0 %810
        %814 = vset.pattern.permute.xlu0 0
        %815 = vperm.xlu0 %814, %v781
        %v816 = vpop.permute.xlu0 %815
        %819 = vset.pattern.permute.xlu0 0
        %820 = vperm.xlu0 %819, %v782
        %v821 = vpop.permute.xlu0 %820
        %v823 = vmul.f32 %v786, %v767
        %v824 = vmul.f32 %v791, %v768
        %v825 = vmul.f32 %v796, %v769
        %v826 = vmul.f32 %v801, %v770
        %v827 = vmul.f32 %v806, %v771
        %v828 = vmul.f32 %v811, %v772
        %v829 = vmul.f32 %v816, %v773
        %v830 = vmul.f32 %v821, %v774
        %v831 = vadd.f32 %v823, %v824
        %v832 = vadd.f32 %v831, %v825
        %v833 = vadd.f32 %v832, %v826
        %v834 = vadd.f32 %v833, %v827
        %v835 = vadd.f32 %v834, %v828
        %v836 = vadd.f32 %v835, %v829
        %v837 = vadd.f32 %v836, %v830
        %v838 = vrot.slane %v837, 4
        %v839 = vadd.f32 %v837, %v838
        %v840 = vrot.slane %v839, 2
        %v841 = vadd.f32 %v839, %v840
        %v842 = vrot.slane %v841, 1
        %v843 = vadd.f32 %v841, %v842
        %v844 = vld [vmem:[#allocation2] sm:$0x1]
        %846 = vset.pattern.permute.xlu0 0
        %847 = vperm.xlu0 %846, %v844
        %v848 = vpop.permute.xlu0 %847
        %v850 = vlaneseq
        %v851 = vshrl.u32 %v850, 7
        %v852 = vsub.s32 0, %v851
        %v853 = vrot.slane %v848, %v852
        %v854 = vadd.f32 %v843, %v853
        %v856 = vrot.slane %v612, 2
        %v858 = vadd.f32 %v559, %v856
        %v859 = vadd.f32 %v858, %v854
        %860 = vst [vmem:[%s326 - $0x6] sm:$0x40] %v859
        %s861 = sand.u32 %s206, 1
        %s862 = scalar_lea.sflag [#allocation4], %s861
        %s863 = sand.u32 %s206, 1
        %s864 = scalar_lea.vmem [#allocation6], %s863
        // Predicated region
        $region57: #{cri_mlp_forward.1} parent=51 // pred_check
          %p865 = pneg %p216
        $region58: #{cri_mlp_forward.1} parent=51 // pred_check_branch
          %867 = sbr.rel (%p865) target = $region60
        $region59: #{cri_mlp_forward.1} parent=51 // pred_region
          %s869 = ssub.s32 16, 16
          %870 = vsyncadd %s862, %s869
          %s871 = smul.addr %s25, 16
          %s872 = scalar_lea.hbm %s8, %s871
          %s874 = sshll.u32 %s864, 4
          %s875 = int_to_ptr.vmem [resolvable:$true] %s874
          %877 = dma.vmem_to_hbm [thread:$0]  %s875, 16, %s872, %s862
        $region60: #{cri_mlp_forward.1} parent=51 // pred_fallthru
          _
      $region52: #{cri_mlp_forward.1} parent=5 // pred_fallthru
        _
      %p878 = scmp.le.s32.totalorder 2, %s20
      // Predicated region
      $region61: #{cri_mlp_forward.1} parent=5 // pred_check
        %p879 = pneg %p878
      $region62: #{cri_mlp_forward.1} parent=5 // pred_check_branch
        %881 = sbr.rel (%p879) target = $region64
      $region63: #{cri_mlp_forward.1} parent=5 // pred_region
        %s882 = ssub.s32 %s20, 2
        // Predicated region
        $region65: #{cri_mlp_forward.1} parent=63 // pred_check
          %p883 = pneg %p222
        $region66: #{cri_mlp_forward.1} parent=63 // pred_check_branch
          %885 = sbr.rel (%p883) target = $region68
        $region67: #{cri_mlp_forward.1} parent=63 // pred_region
          %s886 = sand.u32 %s207, 1
          %s887 = scalar_lea.sflag [#allocation4], %s886
          %s888 = sand.u32 %s207, 1
          %s889 = scalar_lea.vmem [#allocation6], %s888
          %890 = dma.done %s887, 16
        $region68: #{cri_mlp_forward.1} parent=63 // pred_fallthru
          _
      $region64: #{cri_mlp_forward.1} parent=5 // pred_fallthru
        _
    $region6: #{cri_mlp_forward.1} parent=1 // loop_footer
      %s24 = sadd.s32 1, %s20
    $region7: #{cri_mlp_forward.1} parent=1 // loop_footer_branch
      %19 = sbr.rel target = $region3
    $region8: #{cri_mlp_forward.1} parent=1 // loop_exit
      _
    %891 = vsyncpa [#allocation4], 1
    %s892 = scalar_lea.sflag [#allocation4], 1
    %893 = vsyncpa %s892, 1
    %894 = vsyncpa [#allocation5], 1
    %s895 = scalar_lea.sflag [#allocation5], 1
    %896 = vsyncpa %s895, 1

</llo_original>
